<compile_context>
chip_gen: v6e
topology: v6e:2x2x1
jax: 0.10.0
libtpu: 0.0.40
codegen_flags: <defaults>
</compile_context>

<pallas_src>
import functools

import numpy as np
import jax
import jax.numpy as jnp
from jax import lax
from jax.experimental import pallas as pl
from jax.experimental.pallas import tpu as pltpu


# ----------------------------------------------------------------------------
# Enums / indices (the original code imports these; defined here synthetically)
# ----------------------------------------------------------------------------
class TrajParamIndex:
    X = 0; Y = 1; Z = 2; VX = 3; VY = 4; AX = 5; AY = 6
    YAW = 7; LENGTH = 8; WIDTH = 9; HEIGHT = 10
    END_OF_INDEX = 11


class AttributeType:
    HAS_OBJECT = 0; STATIC = 1; OCCLUDED = 2
    END_OF_INDEX = 3


NUM_OBJECT_TYPES = 10  # len(ObjectType)


class CameraIntrinsicIndex:
    FX = 0; FY = 1; CX = 2; CY = 3
    K1 = 4; K2 = 5; K3 = 6; K4 = 7; P1 = 8; P2 = 9
    CAMERA_TYPE = 10; IMAGE_WIDTH = 11; IMAGE_HEIGHT = 12
    END_OF_INDEX = 13


class ExtrinsicIndex:
    QW = 0; QX = 1; QY = 2; QZ = 3; X = 4; Y = 5; Z = 6
    END_OF_INDEX = 7


class CameraType:
    PINHOLE = 0; GENERAL_DISTORT = 1; FISHEYE = 2


def _round_up(x, m):
    return ((x + m - 1) // m) * m


def _pick_row_tile(M):
    """Largest MXU-friendly row tile that divides M; else one full-extent step."""
    for t in (512, 256, 128):
        if M % t == 0:
            return t
    return M


# ----------------------------------------------------------------------------
# Pallas kernel 1: fused prediction heads (motion + type + attribute)
#   rows = B*N folded into M, lane-dense [*, 128] output slab.
# ----------------------------------------------------------------------------
def _fused_heads_kernel(q_ref, w1_ref, b1_ref, w2_ref, b2_ref,
                        sig_ref, scale_ref, shift_ref, o_ref):
    f32 = jnp.float32
    x = q_ref[...]                                                          # [TM, H] bf16
    h = jnp.dot(x, w1_ref[...], preferred_element_type=f32) + b1_ref[...]   # bf16 x bf16 -> f32
    h = jnp.maximum(h, 0.0)
    y = jnp.dot(h.astype(w2_ref.dtype), w2_ref[...],
                preferred_element_type=f32) + b2_ref[...]
    y = jnp.where(sig_ref[...] > 0.5, jax.nn.sigmoid(y), y)
    o_ref[...] = (y * scale_ref[...] + shift_ref[...]).astype(o_ref.dtype)


def fused_heads_forward(fh, queries):
    B, N, H = queries.shape
    M = B * N
    HID = fh["w1"].shape[1]
    OUT = fh["w2"].shape[1]
    x = queries.reshape(M, H)
    TM = _pick_row_tile(M)
    out = pl.pallas_call(
        _fused_heads_kernel,
        out_shape=jax.ShapeDtypeStruct((M, OUT), jnp.float32),
        grid=(M // TM,),
        in_specs=[
            pl.BlockSpec((TM, H), lambda i: (i, 0)),
            pl.BlockSpec((H, HID), lambda i: (0, 0)),
            pl.BlockSpec((1, HID), lambda i: (0, 0)),
            pl.BlockSpec((HID, OUT), lambda i: (0, 0)),
            pl.BlockSpec((1, OUT), lambda i: (0, 0)),
            pl.BlockSpec((1, OUT), lambda i: (0, 0)),
            pl.BlockSpec((1, OUT), lambda i: (0, 0)),
            pl.BlockSpec((1, OUT), lambda i: (0, 0)),
        ],
        out_specs=pl.BlockSpec((TM, OUT), lambda i: (i, 0)),
        compiler_params=pltpu.CompilerParams(dimension_semantics=("parallel",)),
    )(x, fh["w1"], fh["b1"], fh["w2"], fh["b2"],
      fh["sig"], fh["scale"], fh["shift"])
    return out.reshape(B, N, OUT)


def build_fused_head_params(params):
    """Concat the three 2-layer heads into one lane-padded MLP:
    W1cat [H, HID] (three H-wide column blocks), block-diagonal W2 [HID, OUT],
    plus per-output-column sigmoid mask / scale / shift vectors. Weights bf16."""
    mh, th, ah = params["motion_head"], params["type_head"], params["attribute_head"]
    H = mh["w1"].shape[0]
    n_m, n_t, n_a = TrajParamIndex.END_OF_INDEX, NUM_OBJECT_TYPES, AttributeType.END_OF_INDEX
    HID = _round_up(3 * H, 128)
    OUT = _round_up(n_m + n_t + n_a, 128)

    w1 = jnp.zeros((H, HID), jnp.float32)
    w1 = w1.at[:, 0:H].set(mh["w1"]).at[:, H:2 * H].set(th["w1"]).at[:, 2 * H:3 * H].set(ah["w1"])
    b1 = jnp.zeros((1, HID), jnp.float32)
    b1 = b1.at[:, 0:H].set(mh["b1"]).at[:, H:2 * H].set(th["b1"]).at[:, 2 * H:3 * H].set(ah["b1"])

    w2 = jnp.zeros((HID, OUT), jnp.float32)
    w2 = w2.at[0:H, 0:n_m].set(mh["w2"])
    w2 = w2.at[H:2 * H, n_m:n_m + n_t].set(th["w2"])
    w2 = w2.at[2 * H:3 * H, n_m + n_t:n_m + n_t + n_a].set(ah["w2"])
    b2 = jnp.zeros((1, OUT), jnp.float32)
    b2 = b2.at[:, 0:n_m].set(mh["b2"])
    b2 = b2.at[:, n_m:n_m + n_t].set(th["b2"])
    b2 = b2.at[:, n_m + n_t:n_m + n_t + n_a].set(ah["b2"])

    sig = jnp.zeros((1, OUT), jnp.float32)
    sig = sig.at[:, 0:n_m].set(1.0).at[:, n_m + n_t:n_m + n_t + n_a].set(1.0)
    scale = jnp.ones((1, OUT), jnp.float32)
    scale = scale.at[:, 0:n_m].set(params["param_max"] - params["param_min"])
    shift = jnp.zeros((1, OUT), jnp.float32)
    shift = shift.at[:, 0:n_m].set(params["param_min"])
    return {"w1": w1.astype(jnp.bfloat16), "b1": b1,
            "w2": w2.astype(jnp.bfloat16), "b2": b2,
            "sig": sig, "scale": scale, "shift": shift}


def predict_trajectory_parameters(fused_heads, queries):
    n_m = TrajParamIndex.END_OF_INDEX
    n_t = NUM_OBJECT_TYPES
    n_a = AttributeType.END_OF_INDEX
    out = fused_heads_forward(fused_heads, queries)       # [B, N, 128] lane-dense f32 slab
    motion_params = out[..., 0:n_m]
    type_logits = out[..., n_m:n_m + n_t]
    attributes = out[..., n_m + n_t:n_m + n_t + n_a]
    # argmax(softmax(logits)) == argmax(logits)
    object_type = jnp.argmax(type_logits, axis=-1)
    return {"motion_params": motion_params, "object_type": object_type,
            "attributes": attributes, "type_logits": type_logits}


# ----------------------------------------------------------------------------
# Pallas kernel 2: fully fused refinement layer
#   feature MLP (on pre-pooled features) + norm1/self-attn/norm2/cross-attn/norm3/FFN
# ----------------------------------------------------------------------------
def _fused_layer_kernel(q_ref, pooled_ref,
                        fw1_ref, fb1_ref, fw2_ref, fb2_ref,
                        ng_ref, nb_ref,
                        sa_win_ref, sa_bin_ref, sa_wo_ref, sa_bo_ref,
                        fa_wq_ref, fa_bq_ref, fa_wkv_ref, fa_bkv_ref,
                        fa_wo_ref, fa_bo_ref,
                        ffn_w1_ref, ffn_b1_ref, ffn_w2_ref, ffn_b2_ref,
                        o_ref, *, num_heads):
    f32 = jnp.float32
    bf16 = jnp.bfloat16

    # ---- feature MLP on per-query features (already max-pooled over S in XLA) ----
    pooled = pooled_ref[0]                                                    # [N, C] bf16
    fh = jnp.dot(pooled, fw1_ref[...], preferred_element_type=f32) + fb1_ref[...]
    fh = jnp.maximum(fh, 0.0)
    feats = jnp.dot(fh.astype(bf16), fw2_ref[...],
                    preferred_element_type=f32) + fb2_ref[...]                # [N, H] f32

    x = q_ref[0].astype(f32)                                                  # [N, H]
    N, H = x.shape
    d = H // num_heads
    scale = 1.0 / float(d) ** 0.5

    def layer_norm(v, idx):
        mu = jnp.mean(v, axis=-1, keepdims=True)
        var = jnp.mean((v - mu) ** 2, axis=-1, keepdims=True)
        y = (v - mu) * lax.rsqrt(var + 1e-5)
        return y * ng_ref[idx:idx + 1, :] + nb_ref[idx:idx + 1, :]

    def mha(Q, K, V, wo_ref, bo_ref):
        # Per-head attention on contiguous column blocks; no 3-D relayout / transpose.
        outs = []
        for h in range(num_heads):
            sl = slice(h * d, (h + 1) * d)
            Qh = Q[:, sl].astype(bf16)
            Kh = K[:, sl].astype(bf16)
            Vh = V[:, sl].astype(bf16)
            s = lax.dot_general(Qh, Kh, (((1,), (1,)), ((), ())),
                                preferred_element_type=f32) * scale           # [N, N] f32
            s = s - jnp.max(s, axis=-1, keepdims=True)
            p = jnp.exp(s)
            p = p * pl.reciprocal(jnp.sum(p, axis=-1, keepdims=True), approx=True)
            outs.append(jnp.dot(p.astype(bf16), Vh, preferred_element_type=f32))
        a = jnp.concatenate(outs, axis=-1)                                    # [N, H] f32
        return jnp.dot(a.astype(bf16), wo_ref[...],
                       preferred_element_type=f32) + bo_ref[...]

    # --- norm1 -> self-attn (fused QKV: one [H,3H] bf16 matmul) ---
    q = layer_norm(x, 0)
    qkv = jnp.dot(q.astype(bf16), sa_win_ref[...],
                  preferred_element_type=f32) + sa_bin_ref[...]               # [N, 3H]
    q = q + mha(qkv[:, 0:H], qkv[:, H:2 * H], qkv[:, 2 * H:3 * H],
                sa_wo_ref, sa_bo_ref)

    # --- norm2 -> cross-attn (Q from queries, packed KV from features: 2 matmuls) ---
    q = layer_norm(q, 1)
    Qc = jnp.dot(q.astype(bf16), fa_wq_ref[...],
                 preferred_element_type=f32) + fa_bq_ref[...]                 # [N, H]
    kv = jnp.dot(feats.astype(bf16), fa_wkv_ref[...],
                 preferred_element_type=f32) + fa_bkv_ref[...]                # [N, 2H]
    q = q + mha(Qc, kv[:, 0:H], kv[:, H:2 * H], fa_wo_ref, fa_bo_ref)

    # --- norm3 -> FFN ---
    q = layer_norm(q, 2)
    hdd = jnp.dot(q.astype(bf16), ffn_w1_ref[...],
                  preferred_element_type=f32) + ffn_b1_ref[...]
    hdd = jnp.maximum(hdd, 0.0)
    q = q + jnp.dot(hdd.astype(bf16), ffn_w2_ref[...],
                    preferred_element_type=f32) + ffn_b2_ref[...]
    o_ref[0] = q.astype(o_ref.dtype)


def fused_refinement_layer(layer_p, feat_mlp_p, queries, pooled_feats, num_heads):
    """queries: [B, N, H] bf16; pooled_feats: [B, N, C] bf16 (pre-pooled over P*T*cams)."""
    B, N, H = queries.shape
    C = pooled_feats.shape[-1]
    assert H % num_heads == 0, "hidden_dim must be divisible by num_heads"
    H3 = layer_p["sa_win"].shape[1]   # 3H
    H2 = layer_p["fa_wkv"].shape[1]   # 2H
    H4 = layer_p["ffn_w1"].shape[1]   # 4H
    kernel = functools.partial(_fused_layer_kernel, num_heads=num_heads)

    def wspec(shape):
        return pl.BlockSpec(shape, lambda b: (0,) * len(shape))

    return pl.pallas_call(
        kernel,
        out_shape=jax.ShapeDtypeStruct((B, N, H), jnp.bfloat16),
        grid=(B,),
        in_specs=[
            pl.BlockSpec((1, N, H), lambda b: (b, 0, 0)),
            pl.BlockSpec((1, N, C), lambda b: (b, 0, 0)),
            wspec((C, H)), wspec((1, H)), wspec((H, H)), wspec((1, H)),       # feature MLP
            wspec((3, H)), wspec((3, H)),                                     # norm gains / biases
            wspec((H, H3)), wspec((1, H3)), wspec((H, H)), wspec((1, H)),     # self-attn (fused QKV)
            wspec((H, H)), wspec((1, H)),                                     # cross-attn Q
            wspec((H, H2)), wspec((1, H2)),                                   # cross-attn packed KV
            wspec((H, H)), wspec((1, H)),                                     # cross-attn out proj
            wspec((H, H4)), wspec((1, H4)), wspec((H4, H)), wspec((1, H)),    # FFN
        ],
        out_specs=pl.BlockSpec((1, N, H), lambda b: (b, 0, 0)),
        compiler_params=pltpu.CompilerParams(dimension_semantics=("parallel",)),
    )(queries, pooled_feats,
      feat_mlp_p["w1"], feat_mlp_p["b1"], feat_mlp_p["w2"], feat_mlp_p["b2"],
      layer_p["norm_g"], layer_p["norm_b"],
      layer_p["sa_win"], layer_p["sa_bin"], layer_p["sa_wo"], layer_p["sa_bo"],
      layer_p["fa_wq"], layer_p["fa_bq"], layer_p["fa_wkv"], layer_p["fa_bkv"],
      layer_p["fa_wo"], layer_p["fa_bo"],
      layer_p["ffn_w1"], layer_p["ffn_b1"], layer_p["ffn_w2"], layer_p["ffn_b2"])


def build_fused_layer_params(lp):
    """Pack per-layer weights; MXU-operand slabs in bf16, biases / norm params in f32."""
    bf = lambda a: a.astype(jnp.bfloat16)
    sa, fa = lp["self_attn"], lp["feature_attn"]
    return {
        "norm_g": jnp.concatenate([lp["norm1_g"], lp["norm2_g"], lp["norm3_g"]], axis=0),
        "norm_b": jnp.concatenate([lp["norm1_b"], lp["norm2_b"], lp["norm3_b"]], axis=0),
        "sa_win": bf(jnp.concatenate([sa["wq"], sa["wk"], sa["wv"]], axis=1)),
        "sa_bin": jnp.concatenate([sa["bq"], sa["bk"], sa["bv"]], axis=1),
        "sa_wo": bf(sa["wo"]), "sa_bo": sa["bo"],
        "fa_wq": bf(fa["wq"]), "fa_bq": fa["bq"],
        "fa_wkv": bf(jnp.concatenate([fa["wk"], fa["wv"]], axis=1)),
        "fa_bkv": jnp.concatenate([fa["bk"], fa["bv"]], axis=1),
        "fa_wo": bf(fa["wo"]), "fa_bo": fa["bo"],
        "ffn_w1": bf(lp["ffn"]["w1"]), "ffn_b1": lp["ffn"]["b1"],
        "ffn_w2": bf(lp["ffn"]["w2"]), "ffn_b2": lp["ffn"]["b2"],
    }


def build_feature_mlp_params(fm):
    return {"w1": fm["w1"].astype(jnp.bfloat16), "b1": fm["b1"],
            "w2": fm["w2"].astype(jnp.bfloat16), "b2": fm["b2"]}


# ----------------------------------------------------------------------------
# JAX glue (geometry, projection, bilinear sampling)
# ----------------------------------------------------------------------------
def generate_unit_cube_points(num_points):
    points_per_edge = int(np.sqrt(num_points // 6))
    coords = np.linspace(0.0, 1.0, points_per_edge + 1)[:-1]
    xx, yy = np.meshgrid(coords, coords, indexing="ij")
    xx = xx.reshape(-1)
    yy = yy.reshape(-1)
    zeros = np.zeros_like(xx)
    ones = np.ones_like(xx)
    faces = [
        np.stack([zeros, xx, yy], -1),
        np.stack([ones, xx, yy], -1),
        np.stack([xx, zeros, yy], -1),
        np.stack([xx, ones, yy], -1),
        np.stack([xx, yy, zeros], -1),
        np.stack([xx, yy, ones], -1),
    ]
    return np.concatenate(faces, 0).astype(np.float32) - 0.5   # [num_points, 3]


def sample_box_points(motion_params, unit_cube_points):
    length = motion_params[..., TrajParamIndex.LENGTH][..., None]
    width = motion_params[..., TrajParamIndex.WIDTH][..., None]
    height = motion_params[..., TrajParamIndex.HEIGHT][..., None]
    dims = jnp.stack([length, width, height], axis=-1)            # [B, N, 1, 3]
    # TODO(synk): the PyTorch version's extra unsqueeze yields [B,N,1,P,3] which breaks
    # downstream broadcasting; implementing the intended [B,N,P,3].
    return unit_cube_points[None, None, :, :] * dims              # [B, N, P, 3]


def project_points_to_image(points_3d, intrinsic, extrinsic, image_size=None):
    intr = np.asarray(intrinsic, dtype=np.float32)
    extr = np.asarray(extrinsic, dtype=np.float32)
    camera_type = int(intr[CameraIntrinsicIndex.CAMERA_TYPE])
    img_w = float(intr[CameraIntrinsicIndex.IMAGE_WIDTH])
    img_h = float(intr[CameraIntrinsicIndex.IMAGE_HEIGHT])
    if image_size is not None:
        img_w, img_h = float(image_size[0]), float(image_size[1])
    fx, fy = intr[CameraIntrinsicIndex.FX], intr[CameraIntrinsicIndex.FY]
    cx, cy = intr[CameraIntrinsicIndex.CX], intr[CameraIntrinsicIndex.CY]
    k1, k2, k3, k4 = intr[CameraIntrinsicIndex.K1:CameraIntrinsicIndex.K4 + 1]
    p1, p2 = intr[CameraIntrinsicIndex.P1], intr[CameraIntrinsicIndex.P2]
    qw, qx, qy, qz = (extr[ExtrinsicIndex.QW], extr[ExtrinsicIndex.QX],
                      extr[ExtrinsicIndex.QY], extr[ExtrinsicIndex.QZ])
    # Same convention as the PyTorch reference: points_cam = (p - t) @ R.T
    R = np.array([
        [1 - 2 * qy * qy - 2 * qz * qz, 2 * qx * qy - 2 * qz * qw, 2 * qx * qz + 2 * qy * qw],
        [2 * qx * qy + 2 * qz * qw, 1 - 2 * qx * qx - 2 * qz * qz, 2 * qy * qz - 2 * qx * qw],
        [2 * qx * qz - 2 * qy * qw, 2 * qy * qz + 2 * qx * qw, 1 - 2 * qx * qx - 2 * qy * qy],
    ], dtype=np.float32)
    t = np.array([extr[ExtrinsicIndex.X], extr[ExtrinsicIndex.Y], extr[ExtrinsicIndex.Z]],
                 dtype=np.float32)

    points_cam = jnp.matmul(points_3d - t, R.T)
    behind = points_cam[:, 2] <= 0
    z = points_cam[:, 2:3]
    z = jnp.where(z == 0, jnp.full_like(z, 1e-10), z)
    xn = points_cam[:, 0:1] / z
    yn = points_cam[:, 1:2] / z
    if camera_type == CameraType.PINHOLE:
        xd, yd = xn, yn
    elif camera_type == CameraType.GENERAL_DISTORT:
        r2 = xn * xn + yn * yn
        r4 = r2 * r2
        r6 = r4 * r2
        radial = 1.0 + k1 * r2 + k2 * r4 + k3 * r6
        dx_t = 2 * p1 * xn * yn + p2 * (r2 + 2 * xn * xn)
        dy_t = p1 * (r2 + 2 * yn * yn) + 2 * p2 * xn * yn
        xd = xn * radial + dx_t
        yd = yn * radial + dy_t
    elif camera_type == CameraType.FISHEYE:
        r = jnp.sqrt(xn * xn + yn * yn)
        r = jnp.where(r == 0, jnp.full_like(r, 1e-10), r)
        theta = jnp.arctan(r)
        th2 = theta * theta; th4 = th2 * th2; th6 = th4 * th2; th8 = th4 * th4
        theta_d = theta * (1 + k1 * th2 + k2 * th4 + k3 * th6 + k4 * th8)
        scaling = jnp.where(r > 0, theta_d / r, jnp.ones_like(r))
        xd = xn * scaling
        yd = yn * scaling
    else:
        xd, yd = xn, yn
    x_pix = fx * xd + cx
    y_pix = fy * yd + cy
    p2d = jnp.concatenate([x_pix / img_w, y_pix / img_h], axis=1)
    p2d = jnp.where(behind[:, None], jnp.full_like(p2d, -2.0), p2d)
    return p2d


_ONEHOT_GATHER_MAX_HW = 4096


def grid_sample_bilinear(feat, coords):
    """F.grid_sample(mode='bilinear', align_corners=False, padding_mode='zeros').
    feat: [Bt, C, H, W] (NCHW); coords: [Bt, L, 2] in [-1, 1], (x, y) order. -> [Bt, C, L]
    Small feature maps: bilinear gather expressed as one one-hot weight matmul (MXU-friendly)
    instead of 4 XLA gathers.
    """
    Bt, C, H, W = feat.shape
    x = ((coords[..., 0] + 1.0) * W - 1.0) / 2.0
    y = ((coords[..., 1] + 1.0) * H - 1.0) / 2.0
    x0 = jnp.floor(x); x1 = x0 + 1.0
    y0 = jnp.floor(y); y1 = y0 + 1.0
    wx1 = x - x0; wx0 = 1.0 - wx1
    wy1 = y - y0; wy0 = 1.0 - wy1
    flat = feat.reshape(Bt, C, H * W)
    hw = H * W

    def corner(xi, yi, w):
        valid = ((xi >= 0) & (xi <= W - 1) & (yi >= 0) & (yi <= H - 1)).astype(feat.dtype)
        xc = jnp.clip(xi, 0, W - 1).astype(jnp.int32)
        yc = jnp.clip(yi, 0, H - 1).astype(jnp.int32)
        return yc * W + xc, w * valid                               # idx [Bt,L], weight [Bt,L]

    corners = [corner(x0, y0, wx0 * wy0), corner(x1, y0, wx1 * wy0),
               corner(x0, y1, wx0 * wy1), corner(x1, y1, wx1 * wy1)]

    if hw <= _ONEHOT_GATHER_MAX_HW:
        iota = jnp.arange(hw, dtype=jnp.int32)
        Wmat = jnp.zeros(corners[0][0].shape + (hw,), feat.dtype)   # [Bt, L, HW]
        for idx, w in corners:
            Wmat = Wmat + (idx[..., None] == iota).astype(feat.dtype) * w[..., None]
        return jnp.einsum('bch,blh->bcl', flat, Wmat)

    # TODO(synk): large feature maps fall back to XLA gather; a Pallas manual-DMA gather with
    # scalar-prefetched indices would be the next step for production feature-map sizes.
    out = 0.0
    for idx, w in corners:
        g = jnp.take_along_axis(flat, idx[:, None, :], axis=2)      # [Bt, C, L]
        out = out + g * w[:, None, :]
    return out


def gather_point_features(box_points, motion_params, features_dict, calibrations, ego_states):
    """Vectorized over all timesteps at once; per-camera projection + one batched gather."""
    B, N, P = box_points.shape[:3]
    cam_ids = list(features_dict.keys())
    T = features_dict[cam_ids[0]].shape[1]
    C = features_dict[cam_ids[0]].shape[2]
    # TODO(synk): original references undefined self.motion_params; using the layer's predictions.
    params = motion_params

    dt = (ego_states[:, :, 4] - ego_states[:, -1:, 4])[:, :, None, None]     # [B, T, 1, 1]

    def pidx(i):
        return params[..., i][:, None, :, None]                             # [B, 1, N, 1]

    px, py, pz = pidx(TrajParamIndex.X), pidx(TrajParamIndex.Y), pidx(TrajParamIndex.Z)
    vx, vy = pidx(TrajParamIndex.VX), pidx(TrajParamIndex.VY)
    ax, ay = pidx(TrajParamIndex.AX), pidx(TrajParamIndex.AY)
    base_yaw = pidx(TrajParamIndex.YAW)

    pos_x = px + vx * dt + 0.5 * ax * dt * dt                                # [B, T, N, 1]
    pos_y = py + vy * dt + 0.5 * ay * dt * dt
    pos_z = jnp.broadcast_to(pz, pos_x.shape)
    vel_x = vx + ax * dt
    vel_y = vy + ay * dt
    speed = jnp.sqrt(vel_x * vel_x + vel_y * vel_y)
    yaw = jnp.where(speed > 0.1, jnp.arctan2(vel_y, vel_x), base_yaw)        # [B, T, N, 1]
    cos_yaw, sin_yaw = jnp.cos(yaw), jnp.sin(yaw)

    bp = box_points[:, None]                                                 # [B, 1, N, P, 3]
    rx = bp[..., 0] * cos_yaw - bp[..., 1] * sin_yaw                         # [B, T, N, P]
    ry = bp[..., 0] * sin_yaw + bp[..., 1] * cos_yaw
    rz = jnp.broadcast_to(bp[..., 2], rx.shape)
    rotated = jnp.stack([rx, ry, rz], axis=-1)                               # [B, T, N, P, 3]
    center = jnp.concatenate([pos_x, pos_y, pos_z], axis=-1)                 # [B, T, N, 3]
    global_points = rotated + center[:, :, :, None, :]

    # Ego-frame transform, vectorized over T.
    ego_pos = ego_states[:, :, :3][:, :, None, None, :]                      # [B, T, 1, 1, 3]
    ego_yaw = ego_states[:, :, 3][:, :, None, None]                          # [B, T, 1, 1]
    c, s = jnp.cos(ego_yaw), jnp.sin(ego_yaw)
    tr = global_points - ego_pos
    ex = tr[..., 0] * c + tr[..., 1] * s
    ey = -tr[..., 0] * s + tr[..., 1] * c
    ego_points = jnp.stack([ex, ey, tr[..., 2]], axis=-1)                    # [B, T, N, P, 3]

    cam_feats = []
    for cam_id in cam_ids:
        features_cam = features_dict[cam_id]                                 # [B, T, C, Hf, Wf]
        feature_H, feature_W = features_cam.shape[3], features_cam.shape[4]
        calib = calibrations[cam_id]
        img_w = calib.get("image_width", feature_W)
        img_h = calib.get("image_height", feature_H)
        p2d = project_points_to_image(ego_points.reshape(B * T * N * P, 3),
                                      calib["intrinsic"], calib["extrinsic"],
                                      (img_w, img_h))                        # [B*T*N*P, 2]
        p2d = 2.0 * p2d - 1.0
        valid = ((p2d[:, 0] >= -1) & (p2d[:, 0] <= 1)
                 & (p2d[:, 1] >= -1) & (p2d[:, 1] <= 1)).astype(jnp.float32)
        valid = valid.reshape(B, T, N, P)
        p2d = jnp.clip(p2d, -1.0, 1.0)
        sampled = grid_sample_bilinear(
            features_cam.reshape(B * T, C, feature_H, feature_W),
            p2d.reshape(B * T, N * P, 2))                                    # [B*T, C, N*P]
        sampled = sampled.reshape(B, T, C, N, P).transpose(0, 3, 4, 1, 2)    # [B, N, P, T, C]
        sampled = sampled * valid.transpose(0, 2, 3, 1)[..., None]
        cam_feats.append(sampled)
    return jnp.stack(cam_feats, axis=4)                                      # [B, N, P, T, cams, C]


# ----------------------------------------------------------------------------
# Decoder forward
# ----------------------------------------------------------------------------
def trajectory_decoder_forward(params, features_dict, calibrations, ego_states, cfg):
    B = next(iter(features_dict.values())).shape[0]
    queries = jnp.broadcast_to(
        params["trajectory_queries"],
        (B, cfg["num_queries"], cfg["hidden_dim"])).astype(jnp.bfloat16)

    # Pack fused-kernel parameter slabs once (re-used by every layer iteration).
    fused_heads = build_fused_head_params(params)
    fused_layers = [build_fused_layer_params(lp) for lp in params["layers"]]
    feat_mlp_p = build_feature_mlp_params(params["feature_mlp"])

    all_predictions = []
    for layer_idx in range(cfg["num_layers"]):
        predictions = predict_trajectory_parameters(fused_heads, queries)
        all_predictions.append(predictions)
        if layer_idx == cfg["num_layers"] - 1:
            break
        box_points = sample_box_points(predictions["motion_params"], params["unit_cube_points"])
        point_features = gather_point_features(box_points, predictions["motion_params"],
                                               features_dict, calibrations, ego_states)
        Bp, N = point_features.shape[:2]
        C = point_features.shape[-1]
        # Pre-pool the max over S = P*T*cams in XLA so the fused layer kernel only holds a
        # [B, N, C] block resident (keeps the kernel inside v7x's 64 MiB VMEM at real sizes).
        pooled = jnp.max(point_features.reshape(Bp, N, -1, C), axis=2).astype(jnp.bfloat16)
        queries = fused_refinement_layer(fused_layers[layer_idx], feat_mlp_p,
                                         queries, pooled, cfg["num_heads"])
    final = all_predictions[-1]
    # TODO(synk): params_to_trajectories builds Python ObstacleTrajectory objects; returning
    # the equivalent tensor dict (batch 0) with the validity mask instead.
    trajectories = {
        "motion_params": final["motion_params"][0],
        "object_type": final["object_type"][0],
        "attributes": final["attributes"][0],
        "valid_mask": final["attributes"][0, :, AttributeType.HAS_OBJECT] > 0.5,
    }
    return trajectories, all_predictions


# ----------------------------------------------------------------------------
# Deterministic parameter init
# ----------------------------------------------------------------------------
def init_params(key, cfg):
    H = cfg["hidden_dim"]
    C = cfg["feature_dim"]
    Nq = cfg["num_queries"]
    keys = iter(jax.random.split(key, 256))

    def rnd(shape, scale=0.1):
        return jax.random.normal(next(keys), shape, dtype=jnp.float32) * scale

    def head(din, dmid, dout):
        return {"w1": rnd((din, dmid)), "b1": rnd((1, dmid), 0.01),
                "w2": rnd((dmid, dout)), "b2": rnd((1, dout), 0.01)}

    def attn():
        return {"wq": rnd((H, H)), "wk": rnd((H, H)), "wv": rnd((H, H)),
                "bq": rnd((1, H), 0.01), "bk": rnd((1, H), 0.01), "bv": rnd((1, H), 0.01),
                "wo": rnd((H, H)), "bo": rnd((1, H), 0.01)}

    p = {
        "trajectory_queries": rnd((1, Nq, H), 1.0),
        "motion_head": head(H, H, TrajParamIndex.END_OF_INDEX),
        "type_head": head(H, H, NUM_OBJECT_TYPES),
        "attribute_head": head(H, H, AttributeType.END_OF_INDEX),
        "feature_mlp": head(C, H, H),
        "param_min": jnp.array([-50., -50., -5., -15., -15., -5., -5., -3.14, 0.5, 0.5, 0.5],
                               jnp.float32),
        "param_max": jnp.array([50., 50., 5., 15., 15., 5., 5., 3.14, 10., 5., 3.],
                               jnp.float32),
        "unit_cube_points": jnp.asarray(generate_unit_cube_points(cfg["num_points"])),
    }
    layers = []
    for _ in range(cfg["num_layers"]):
        layers.append({
            "self_attn": attn(),
            "feature_attn": attn(),
            "ffn": head(H, 4 * H, H),
            "norm1_g": jnp.ones((1, H), jnp.float32), "norm1_b": jnp.zeros((1, H), jnp.float32),
            "norm2_g": jnp.ones((1, H), jnp.float32), "norm2_b": jnp.zeros((1, H), jnp.float32),
            "norm3_g": jnp.ones((1, H), jnp.float32), "norm3_b": jnp.zeros((1, H), jnp.float32),
        })
    p["layers"] = layers
    return p


# ----------------------------------------------------------------------------
# Main
# ----------------------------------------------------------------------------
if __name__ == "__main__":
    cfg = dict(num_layers=2, num_queries=8, feature_dim=16, hidden_dim=32,
               num_points=24, num_heads=8)
    B, T, Hf, Wf = 2, 2, 8, 8
    num_cameras = 2

    key = jax.random.PRNGKey(0)
    k_params, k_feat0, k_feat1, k_ego = jax.random.split(key, 4)
    params = init_params(k_params, cfg)

    features_dict = {
        0: jax.random.normal(k_feat0, (B, T, cfg["feature_dim"], Hf, Wf), dtype=jnp.float32),
        1: jax.random.normal(k_feat1, (B, T, cfg["feature_dim"], Hf, Wf), dtype=jnp.float32),
    }

    def make_calib(yaw_deg, tx):
        intr = np.zeros(CameraIntrinsicIndex.END_OF_INDEX, np.float32)
        intr[CameraIntrinsicIndex.FX] = 40.0
        intr[CameraIntrinsicIndex.FY] = 40.0
        intr[CameraIntrinsicIndex.CX] = 32.0
        intr[CameraIntrinsicIndex.CY] = 32.0
        intr[CameraIntrinsicIndex.CAMERA_TYPE] = CameraType.PINHOLE
        intr[CameraIntrinsicIndex.IMAGE_WIDTH] = 64.0
        intr[CameraIntrinsicIndex.IMAGE_HEIGHT] = 64.0
        extr = np.zeros(ExtrinsicIndex.END_OF_INDEX, np.float32)
        half = np.deg2rad(yaw_deg) / 2.0
        extr[ExtrinsicIndex.QW] = np.cos(half)
        extr[ExtrinsicIndex.QZ] = np.sin(half)
        extr[ExtrinsicIndex.X] = tx
        return {"intrinsic": intr, "extrinsic": extr, "image_width": 64, "image_height": 64}

    calibrations = {0: make_calib(0.0, 0.5), 1: make_calib(180.0, -0.5)}

    ego_pos = jax.random.normal(k_ego, (B, T, 4), dtype=jnp.float32) * 0.5
    timestamps = jnp.broadcast_to(jnp.arange(T, dtype=jnp.float32)[None, :, None] * 0.1, (B, T, 1))
    ego_states = jnp.concatenate([ego_pos, timestamps], axis=-1)   # [B, T, 5]

    trajectories, all_predictions = trajectory_decoder_forward(
        params, features_dict, calibrations, ego_states, cfg)
    jax.block_until_ready((trajectories, all_predictions))
    print("KERNEL_OK")
</pallas_src>

<mosaic_0001>
module attributes {stable_mosaic.version = 11 : i64} {
  func.func @_fused_heads_kernel(%arg0: i32, %arg1: memref<16x32xbf16, #tpu.memory_space<vmem>>, %arg2: memref<32x128xbf16, #tpu.memory_space<vmem>>, %arg3: memref<1x128xf32, #tpu.memory_space<vmem>>, %arg4: memref<128x128xbf16, #tpu.memory_space<vmem>>, %arg5: memref<1x128xf32, #tpu.memory_space<vmem>>, %arg6: memref<1x128xf32, #tpu.memory_space<vmem>>, %arg7: memref<1x128xf32, #tpu.memory_space<vmem>>, %arg8: memref<1x128xf32, #tpu.memory_space<vmem>>, %arg9: memref<16x128xf32, #tpu.memory_space<vmem>>) attributes {dimension_semantics = [#tpu.dimension_semantics<parallel>], iteration_bounds = array<i64: 1>, scalar_prefetch = 0 : i64, scratch_operands = 0 : i64, tpu.core_type = #tpu.core_type<tc>, window_params = [{transform_indices = @transform_0, window_bounds = array<i64: 16, 32>}, {pipeline_mode = #tpu.pipeline_mode<synchronous>, transform_indices = @transform_1, window_bounds = array<i64: 32, 128>}, {pipeline_mode = #tpu.pipeline_mode<synchronous>, transform_indices = @transform_2, window_bounds = array<i64: 1, 128>}, {pipeline_mode = #tpu.pipeline_mode<synchronous>, transform_indices = @transform_3, window_bounds = array<i64: 128, 128>}, {pipeline_mode = #tpu.pipeline_mode<synchronous>, transform_indices = @transform_4, window_bounds = array<i64: 1, 128>}, {pipeline_mode = #tpu.pipeline_mode<synchronous>, transform_indices = @transform_5, window_bounds = array<i64: 1, 128>}, {pipeline_mode = #tpu.pipeline_mode<synchronous>, transform_indices = @transform_6, window_bounds = array<i64: 1, 128>}, {pipeline_mode = #tpu.pipeline_mode<synchronous>, transform_indices = @transform_7, window_bounds = array<i64: 1, 128>}, {transform_indices = @transform_8, window_bounds = array<i64: 16, 128>}]} {
    %c0 = arith.constant 0 : index
    %c0_0 = arith.constant 0 : index
    %0 = vector.load %arg1[%c0, %c0_0] : memref<16x32xbf16, #tpu.memory_space<vmem>>, vector<16x32xbf16>
    %c0_1 = arith.constant 0 : index
    %c0_2 = arith.constant 0 : index
    %1 = vector.load %arg2[%c0_1, %c0_2] : memref<32x128xbf16, #tpu.memory_space<vmem>>, vector<32x128xbf16>
    %cst = arith.constant dense<0.000000e+00> : vector<16x128xf32>
    %2 = tpu.matmul %0, %1, %cst {dimension_numbers = #tpu.dot_dimension_numbers<[1], [0], [0], [1], [0, 0, 1, 1], [], []>} : vector<16x32xbf16>, vector<32x128xbf16>, vector<16x128xf32> -> vector<16x128xf32>
    %c0_3 = arith.constant 0 : index
    %c0_4 = arith.constant 0 : index
    %3 = vector.load %arg3[%c0_3, %c0_4] : memref<1x128xf32, #tpu.memory_space<vmem>>, vector<1x128xf32>
    %4 = vector.broadcast %3 : vector<1x128xf32> to vector<16x128xf32>
    %5 = arith.addf %2, %4 : vector<16x128xf32>
    %cst_5 = arith.constant 0.000000e+00 : f32
    %6 = vector.broadcast %cst_5 : f32 to vector<16x128xf32>
    %7 = arith.maximumf %5, %6 : vector<16x128xf32>
    %8 = arith.truncf %7 : vector<16x128xf32> to vector<16x128xbf16>
    %c0_6 = arith.constant 0 : index
    %c0_7 = arith.constant 0 : index
    %9 = vector.load %arg4[%c0_6, %c0_7] : memref<128x128xbf16, #tpu.memory_space<vmem>>, vector<128x128xbf16>
    %cst_8 = arith.constant dense<0.000000e+00> : vector<16x128xf32>
    %10 = tpu.matmul %8, %9, %cst_8 {dimension_numbers = #tpu.dot_dimension_numbers<[1], [0], [0], [1], [0, 0, 1, 1], [], []>} : vector<16x128xbf16>, vector<128x128xbf16>, vector<16x128xf32> -> vector<16x128xf32>
    %c0_9 = arith.constant 0 : index
    %c0_10 = arith.constant 0 : index
    %11 = vector.load %arg5[%c0_9, %c0_10] : memref<1x128xf32, #tpu.memory_space<vmem>>, vector<1x128xf32>
    %12 = vector.broadcast %11 : vector<1x128xf32> to vector<16x128xf32>
    %13 = arith.addf %10, %12 : vector<16x128xf32>
    %c0_11 = arith.constant 0 : index
    %c0_12 = arith.constant 0 : index
    %14 = vector.load %arg6[%c0_11, %c0_12] : memref<1x128xf32, #tpu.memory_space<vmem>>, vector<1x128xf32>
    %cst_13 = arith.constant 5.000000e-01 : f32
    %15 = vector.broadcast %cst_13 : f32 to vector<1x128xf32>
    %16 = arith.cmpf ogt, %14, %15 : vector<1x128xf32>
    %17 = arith.negf %13 : vector<16x128xf32>
    %18 = math.exp %17 : vector<16x128xf32>
    %cst_14 = arith.constant 1.000000e+00 : f32
    %19 = vector.broadcast %cst_14 : f32 to vector<16x128xf32>
    %20 = arith.addf %19, %18 : vector<16x128xf32>
    %21 = arith.divf %19, %20 : vector<16x128xf32>
    %22 = vector.shape_cast %16 : vector<1x128xi1> to vector<1x128xi1>
    %23 = vector.broadcast %22 : vector<1x128xi1> to vector<16x128xi1>
    %24 = arith.select %23, %21, %13 : vector<16x128xi1>, vector<16x128xf32>
    %c0_15 = arith.constant 0 : index
    %c0_16 = arith.constant 0 : index
    %25 = vector.load %arg7[%c0_15, %c0_16] : memref<1x128xf32, #tpu.memory_space<vmem>>, vector<1x128xf32>
    %26 = vector.broadcast %25 : vector<1x128xf32> to vector<16x128xf32>
    %27 = arith.mulf %24, %26 : vector<16x128xf32>
    %c0_17 = arith.constant 0 : index
    %c0_18 = arith.constant 0 : index
    %28 = vector.load %arg8[%c0_17, %c0_18] : memref<1x128xf32, #tpu.memory_space<vmem>>, vector<1x128xf32>
    %29 = vector.broadcast %28 : vector<1x128xf32> to vector<16x128xf32>
    %30 = arith.addf %27, %29 : vector<16x128xf32>
    %c0_19 = arith.constant 0 : index
    %c0_20 = arith.constant 0 : index
    %31 = vector.load %arg9[%c0_19, %c0_20] : memref<16x128xf32, #tpu.memory_space<vmem>>, vector<16x128xf32>
    tpu.vector_store %arg9[%c0_19, %c0_20], %30 {strides = array<i32>} : memref<16x128xf32, #tpu.memory_space<vmem>>, vector<16x128xf32>,
    return
  }
  func.func @transform_0(%arg0: i32) -> (i32, i32) {
    %c0_i32 = arith.constant 0 : i32
    %c0_i32_0 = arith.constant 0 : i32
    return %arg0, %c0_i32 : i32, i32
  }
  func.func @transform_1(%arg0: i32) -> (i32, i32) {
    %c0_i32 = arith.constant 0 : i32
    %c0_i32_0 = arith.constant 0 : i32
    %c0_i32_1 = arith.constant 0 : i32
    return %c0_i32, %c0_i32_0 : i32, i32
  }
  func.func @transform_2(%arg0: i32) -> (i32, i32) {
    %c0_i32 = arith.constant 0 : i32
    %c0_i32_0 = arith.constant 0 : i32
    %c0_i32_1 = arith.constant 0 : i32
    return %c0_i32, %c0_i32_0 : i32, i32
  }
  func.func @transform_3(%arg0: i32) -> (i32, i32) {
    %c0_i32 = arith.constant 0 : i32
    %c0_i32_0 = arith.constant 0 : i32
    %c0_i32_1 = arith.constant 0 : i32
    return %c0_i32, %c0_i32_0 : i32, i32
  }
  func.func @transform_4(%arg0: i32) -> (i32, i32) {
    %c0_i32 = arith.constant 0 : i32
    %c0_i32_0 = arith.constant 0 : i32
    %c0_i32_1 = arith.constant 0 : i32
    return %c0_i32, %c0_i32_0 : i32, i32
  }
  func.func @transform_5(%arg0: i32) -> (i32, i32) {
    %c0_i32 = arith.constant 0 : i32
    %c0_i32_0 = arith.constant 0 : i32
    %c0_i32_1 = arith.constant 0 : i32
    return %c0_i32, %c0_i32_0 : i32, i32
  }
  func.func @transform_6(%arg0: i32) -> (i32, i32) {
    %c0_i32 = arith.constant 0 : i32
    %c0_i32_0 = arith.constant 0 : i32
    %c0_i32_1 = arith.constant 0 : i32
    return %c0_i32, %c0_i32_0 : i32, i32
  }
  func.func @transform_7(%arg0: i32) -> (i32, i32) {
    %c0_i32 = arith.constant 0 : i32
    %c0_i32_0 = arith.constant 0 : i32
    %c0_i32_1 = arith.constant 0 : i32
    return %c0_i32, %c0_i32_0 : i32, i32
  }
  func.func @transform_8(%arg0: i32) -> (i32, i32) {
    %c0_i32 = arith.constant 0 : i32
    %c0_i32_0 = arith.constant 0 : i32
    return %arg0, %c0_i32 : i32, i32
  }
}

</mosaic_0001>

<llo_original>
// kernel: tpu_custom_call.1
$region0: #{tpu_custom_call.1}
  #allocation0 [shape = 'u32[]', space=smem, size = 0x4, offset = 0x4, fixed_abs, tag = 'smem constant byte address 0x4 - core index']
  #allocation1 [shape = 'u32[144,128]{1,0:T(1,128)}', space=vmem, size = 0x12000, scoped, tag = 'internal scratch']
  %s0 = inlined_call_operand.hbm [shape: bf16[16,32], index: 0, kind: input, shape index: {}]
  %s1 = inlined_call_operand.hbm [shape: bf16[32,128], index: 1, kind: input, shape index: {}]
  %s2 = inlined_call_operand.vmem [shape: f32[1,128], index: 2, kind: input, shape index: {}]
  %s3 = inlined_call_operand.hbm [shape: bf16[128,128], index: 3, kind: input, shape index: {}]
  %s4 = inlined_call_operand.vmem [shape: f32[1,128], index: 4, kind: input, shape index: {}]
  %s5 = inlined_call_operand.vmem [shape: f32[1,128], index: 5, kind: input, shape index: {}]
  %s6 = inlined_call_operand.vmem [shape: f32[1,128], index: 6, kind: input, shape index: {}]
  %s7 = inlined_call_operand.vmem [shape: f32[1,128], index: 7, kind: input, shape index: {}]
  %s8 = inlined_call_operand.hbm [shape: f32[16,128], index: 8, kind: output, shape index: {}]
  %s9 = sld [smem:[#allocation0]]
  $region54: #{tpu_custom_call.1} parent=0
    _
  %s11 = ssub.s32 1, %s9
  %s12 = scalar_select 0, %s11, %s9
  $region1: #{tpu_custom_call.1} parent=0
    #allocation2 [shape = 'u8[4096]{0}', space=vmem, size = 0x1000, scoped, tag = 'input window, operand 0, single buffered']
    #allocation3 [shape = 's32[1]{0}', space=sflag, size = 0x4, scoped, tag = 'scoped memory for tpu_custom_call.1']
    #allocation4 [shape = 's32[1]{0}', space=sflag, size = 0x4, scoped, tag = 'scoped memory for tpu_custom_call.1']
    #allocation5 [shape = 'u8[8192]{0}', space=vmem, size = 0x2000, scoped, tag = 'input window, operand 1, single buffered']
    #allocation6 [shape = 's32[1]{0}', space=sflag, size = 0x4, scoped, tag = 'scoped memory for tpu_custom_call.1']
    #allocation7 [shape = 'u8[32768]{0}', space=vmem, size = 0x8000, scoped, tag = 'input window, operand 3, single buffered']
    #allocation8 [shape = 'u8[8192]{0}', space=vmem, size = 0x2000, scoped, tag = 'output window, operand 0, single buffered']
    %13 = vsyncpa [#allocation3], 0
    %14 = vsyncpa [#allocation6], 0
    %15 = vsyncpa [#allocation4], 0
    // Predicated region
    $region2: #{tpu_custom_call.1} parent=1 // pred_check
      _
    $region3: #{tpu_custom_call.1} parent=1 // pred_check_branch
      %17 = sbr.rel (0) target = $region5
    $region4: #{tpu_custom_call.1} parent=1 // pred_region
      %s19 = ssub.s32 128, 128
      %20 = vsyncadd [#allocation3], %s19
      %s21 = sshll.u32 [#allocation2], 4
      %s22 = int_to_ptr.vmem [resolvable:$true] %s21
      %27 = dma.hbm_to_vmem [thread:$0]  %s0, 128, %s22, [#allocation3], 64, 64, 4
    $region5: #{tpu_custom_call.1} parent=1 // pred_fallthru
      _
    // Predicated region
    $region6: #{tpu_custom_call.1} parent=1 // pred_check
      _
    $region7: #{tpu_custom_call.1} parent=1 // pred_check_branch
      %29 = sbr.rel (0) target = $region9
    $region8: #{tpu_custom_call.1} parent=1 // pred_region
      %s31 = ssub.s32 256, 256
      %32 = vsyncadd [#allocation6], %s31
      %s33 = sshll.u32 [#allocation5], 4
      %s34 = int_to_ptr.vmem [resolvable:$true] %s33
      %39 = dma.hbm_to_vmem [thread:$0]  %s1, 256, %s34, [#allocation6], 64, 64, 4
    $region9: #{tpu_custom_call.1} parent=1 // pred_fallthru
      _
    // Predicated region
    $region10: #{tpu_custom_call.1} parent=1 // pred_check
      _
    $region11: #{tpu_custom_call.1} parent=1 // pred_check_branch
      %41 = sbr.rel (0) target = $region13
    $region12: #{tpu_custom_call.1} parent=1 // pred_region
      _
    $region13: #{tpu_custom_call.1} parent=1 // pred_fallthru
      _
    // Predicated region
    $region14: #{tpu_custom_call.1} parent=1 // pred_check
      _
    $region15: #{tpu_custom_call.1} parent=1 // pred_check_branch
      %43 = sbr.rel (0) target = $region17
    $region16: #{tpu_custom_call.1} parent=1 // pred_region
      %s45 = ssub.s32 1024, 1024
      %46 = vsyncadd [#allocation6], %s45
      %s47 = sshll.u32 [#allocation7], 4
      %s48 = int_to_ptr.vmem [resolvable:$true] %s47
      %53 = dma.hbm_to_vmem [thread:$0]  %s3, 1024, %s48, [#allocation6], 64, 64, 4
    $region17: #{tpu_custom_call.1} parent=1 // pred_fallthru
      _
    // Predicated region
    $region18: #{tpu_custom_call.1} parent=1 // pred_check
      _
    $region19: #{tpu_custom_call.1} parent=1 // pred_check_branch
      %55 = sbr.rel (0) target = $region21
    $region20: #{tpu_custom_call.1} parent=1 // pred_region
      _
    $region21: #{tpu_custom_call.1} parent=1 // pred_fallthru
      _
    // Predicated region
    $region22: #{tpu_custom_call.1} parent=1 // pred_check
      _
    $region23: #{tpu_custom_call.1} parent=1 // pred_check_branch
      %57 = sbr.rel (0) target = $region25
    $region24: #{tpu_custom_call.1} parent=1 // pred_region
      _
    $region25: #{tpu_custom_call.1} parent=1 // pred_fallthru
      _
    // Predicated region
    $region26: #{tpu_custom_call.1} parent=1 // pred_check
      _
    $region27: #{tpu_custom_call.1} parent=1 // pred_check_branch
      %59 = sbr.rel (0) target = $region29
    $region28: #{tpu_custom_call.1} parent=1 // pred_region
      _
    $region29: #{tpu_custom_call.1} parent=1 // pred_fallthru
      _
    // Predicated region
    $region30: #{tpu_custom_call.1} parent=1 // pred_check
      _
    $region31: #{tpu_custom_call.1} parent=1 // pred_check_branch
      %61 = sbr.rel (0) target = $region33
    $region32: #{tpu_custom_call.1} parent=1 // pred_region
      _
    $region33: #{tpu_custom_call.1} parent=1 // pred_fallthru
      _
    // Predicated region
    $region34: #{tpu_custom_call.1} parent=1 // pred_check
      _
    $region35: #{tpu_custom_call.1} parent=1 // pred_check_branch
      %63 = sbr.rel (0) target = $region37
    $region36: #{tpu_custom_call.1} parent=1 // pred_region
      %64 = dma.done [#allocation3], 128
    $region37: #{tpu_custom_call.1} parent=1 // pred_fallthru
      _
    // Predicated region
    $region38: #{tpu_custom_call.1} parent=1 // pred_check
      _
    $region39: #{tpu_custom_call.1} parent=1 // pred_check_branch
      %66 = sbr.rel (0) target = $region41
    $region40: #{tpu_custom_call.1} parent=1 // pred_region
      %67 = dma.done [#allocation6], 256
    $region41: #{tpu_custom_call.1} parent=1 // pred_fallthru
      _
    // Predicated region
    $region42: #{tpu_custom_call.1} parent=1 // pred_check
      _
    $region43: #{tpu_custom_call.1} parent=1 // pred_check_branch
      %69 = sbr.rel (0) target = $region45
    $region44: #{tpu_custom_call.1} parent=1 // pred_region
      %70 = dma.done [#allocation6], 1024
    $region45: #{tpu_custom_call.1} parent=1 // pred_fallthru
      _
    %v72 = vld [vmem:[#allocation2] sm:$0xf]
    %v73 = vld [vmem:[#allocation2 + $0x4] sm:$0xf]
    %v74 = vld [vmem:[#allocation5] sm:$0xf]
    %v75 = vld [vmem:[#allocation5 + $0x4] sm:$0xf]
    %v76 = vld [vmem:[#allocation5 + $0x8] sm:$0xf]
    %v77 = vld [vmem:[#allocation5 + $0xc] sm:$0xf]
    %v78 = vld [vmem:[%s2] sm:$0x1]
    %v80 = vlaneseq
    %v81 = vshrl.u32 %v80, 7
    %v82 = vsub.s32 0, %v81
    %v83 = vrot.slane %v78, %v82
    %v87 = vunpack.c.l.b16 %v72
    %v88 = vunpack.c.l.b16 %v73
    %v89 = vpack.c.b16 %v88, %v87
    %v94 = vunpack.c.l.b16 %v74
    %v95 = vunpack.c.l.b16 %v75
    %v96 = vunpack.c.l.b16 %v76
    %v97 = vunpack.c.l.b16 %v77
    %v98 = vpack.c.b16 %v95, %v94
    %v99 = vpack.c.b16 %v97, %v96
    %vm102 = vcmask 261120
    %v104 = vsel %vm102, %v89, 0
    %106 = vmatprep.subr.bf16.mxu0 0
    %107 = vmatpush1.bf16.msra.mxu0 0
    %108 = vmatprep.subr.bf16.mxu0 0
    %109 = vmatpush1.bf16.msra.mxu0 0
    %110 = vmatprep.subr.bf16.mxu0 0
    %111 = vmatpush1.bf16.msra.mxu0 0
    %112 = vmatprep.subr.bf16.mxu0 0
    %113 = vmatpush1.bf16.msra.mxu0 0
    %114 = vmatprep.subr.bf16.mxu0 0
    %115 = vmatpush1.bf16.msra.mxu0 0
    %116 = vmatprep.subr.bf16.mxu0 0
    %117 = vmatpush1.bf16.msra.mxu0 0
    %118 = vmatprep.subr.bf16.mxu0 0
    %119 = vmatpush1.bf16.msra.mxu0 %v99
    %120 = vmatprep.subr.bf16.mxu0 0
    %121 = vmatpush1.bf16.msra.mxu0 %v98
    %122 = vmatprep.subr.bf16.mxu0 0
    %123 = vmatpush2.bf16.msra.mxu0 0
    %124 = vmatprep.subr.bf16.mxu0 0
    %125 = vmatpush2.bf16.msra.mxu0 0
    %126 = vmatprep.subr.bf16.mxu0 0
    %127 = vmatpush2.bf16.msra.mxu0 0
    %128 = vmatprep.subr.bf16.mxu0 0
    %129 = vmatpush2.bf16.msra.mxu0 0
    %130 = vmatprep.subr.bf16.mxu0 0
    %131 = vmatpush2.bf16.msra.mxu0 0
    %132 = vmatprep.subr.bf16.mxu0 0
    %133 = vmatpush2.bf16.msra.mxu0 0
    %134 = vmatprep.subr.bf16.mxu0 0
    %135 = vmatpush2.bf16.msra.mxu0 0
    %136 = vmatprep.subr.bf16.mxu0 0
    %137 = vmatpush2.bf16.msra.mxu0 0
    %138 = vmatprep.mubr.bf16.mxu0 0
    %139 = vmatmul.mubr.bf16.gmra.mxu0 %v104
    %v140 = vpop.f32.mrf.mxu0
    %v141 = vadd.f32 %v83, %v140
    %v142 = vpop.f32.mrf.mxu0
    %v143 = vpop.f32.mrf.mxu0
    %v144 = vadd.f32 %v83, %v143
    %v145 = vpop.f32.mrf.mxu0
    %146 = vdwg.mxu0
    %v147 = vmax.f32 %v141, 0.0
    %v148 = vmax.f32 %v144, 0.0
    %v149 = vpack.c.bf16 %v148, %v147
    %v150 = vld [vmem:[#allocation7] sm:$0xf]
    %v151 = vld [vmem:[#allocation7 + $0x4] sm:$0xf]
    %v152 = vld [vmem:[#allocation7 + $0x8] sm:$0xf]
    %v153 = vld [vmem:[#allocation7 + $0xc] sm:$0xf]
    %v154 = vld [vmem:[#allocation7 + $0x10] sm:$0xf]
    %v155 = vld [vmem:[#allocation7 + $0x14] sm:$0xf]
    %v156 = vld [vmem:[#allocation7 + $0x18] sm:$0xf]
    %v157 = vld [vmem:[#allocation7 + $0x1c] sm:$0xf]
    %v158 = vld [vmem:[#allocation7 + $0x20] sm:$0xf]
    %v159 = vld [vmem:[#allocation7 + $0x24] sm:$0xf]
    %v160 = vld [vmem:[#allocation7 + $0x28] sm:$0xf]
    %v161 = vld [vmem:[#allocation7 + $0x2c] sm:$0xf]
    %v162 = vld [vmem:[#allocation7 + $0x30] sm:$0xf]
    %v163 = vld [vmem:[#allocation7 + $0x34] sm:$0xf]
    %v164 = vld [vmem:[#allocation7 + $0x38] sm:$0xf]
    %v165 = vld [vmem:[#allocation7 + $0x3c] sm:$0xf]
    %v166 = vld [vmem:[%s4] sm:$0x1]
    %v168 = vlaneseq
    %v169 = vshrl.u32 %v168, 7
    %v170 = vsub.s32 0, %v169
    %v171 = vrot.slane %v166, %v170
    %v189 = vunpack.c.l.b16 %v150
    %v190 = vunpack.c.l.b16 %v151
    %v191 = vunpack.c.l.b16 %v152
    %v192 = vunpack.c.l.b16 %v153
    %v193 = vunpack.c.l.b16 %v154
    %v194 = vunpack.c.l.b16 %v155
    %v195 = vunpack.c.l.b16 %v156
    %v196 = vunpack.c.l.b16 %v157
    %v197 = vunpack.c.l.b16 %v158
    %v198 = vunpack.c.l.b16 %v159
    %v199 = vunpack.c.l.b16 %v160
    %v200 = vunpack.c.l.b16 %v161
    %v201 = vunpack.c.l.b16 %v162
    %v202 = vunpack.c.l.b16 %v163
    %v203 = vunpack.c.l.b16 %v164
    %v204 = vunpack.c.l.b16 %v165
    %v205 = vpack.c.b16 %v190, %v189
    %v206 = vpack.c.b16 %v192, %v191
    %v207 = vpack.c.b16 %v194, %v193
    %v208 = vpack.c.b16 %v196, %v195
    %v209 = vpack.c.b16 %v198, %v197
    %v210 = vpack.c.b16 %v200, %v199
    %v211 = vpack.c.b16 %v202, %v201
    %v212 = vpack.c.b16 %v204, %v203
    %221 = vmatprep.subr.bf16.mxu0 0
    %222 = vmatpush1.bf16.msra.mxu0 %v212
    %223 = vmatprep.subr.bf16.mxu0 0
    %224 = vmatpush1.bf16.msra.mxu0 %v211
    %225 = vmatprep.subr.bf16.mxu0 0
    %226 = vmatpush1.bf16.msra.mxu0 %v210
    %227 = vmatprep.subr.bf16.mxu0 0
    %228 = vmatpush1.bf16.msra.mxu0 %v209
    %229 = vmatprep.subr.bf16.mxu0 0
    %230 = vmatpush1.bf16.msra.mxu0 %v208
    %231 = vmatprep.subr.bf16.mxu0 0
    %232 = vmatpush1.bf16.msra.mxu0 %v207
    %233 = vmatprep.subr.bf16.mxu0 0
    %234 = vmatpush1.bf16.msra.mxu0 %v206
    %235 = vmatprep.subr.bf16.mxu0 0
    %236 = vmatpush1.bf16.msra.mxu0 %v205
    %237 = vmatprep.subr.bf16.mxu0 0
    %238 = vmatpush2.bf16.msra.mxu0 0
    %239 = vmatprep.subr.bf16.mxu0 0
    %240 = vmatpush2.bf16.msra.mxu0 0
    %241 = vmatprep.subr.bf16.mxu0 0
    %242 = vmatpush2.bf16.msra.mxu0 0
    %243 = vmatprep.subr.bf16.mxu0 0
    %244 = vmatpush2.bf16.msra.mxu0 0
    %245 = vmatprep.subr.bf16.mxu0 0
    %246 = vmatpush2.bf16.msra.mxu0 0
    %247 = vmatprep.subr.bf16.mxu0 0
    %248 = vmatpush2.bf16.msra.mxu0 0
    %249 = vmatprep.subr.bf16.mxu0 0
    %250 = vmatpush2.bf16.msra.mxu0 0
    %251 = vmatprep.subr.bf16.mxu0 0
    %252 = vmatpush2.bf16.msra.mxu0 0
    %253 = vmatprep.mubr.bf16.mxu0 0
    %254 = vmatmul.mubr.bf16.gmra.mxu0 %v149
    %v255 = vpop.f32.mrf.mxu0
    %v256 = vadd.f32 %v171, %v255
    %v257 = vpop.f32.mrf.mxu0
    %v258 = vpop.f32.mrf.mxu0
    %v259 = vadd.f32 %v171, %v258
    %v260 = vpop.f32.mrf.mxu0
    %261 = vdwg.mxu0
    %v262 = vld [vmem:[%s5] sm:$0x1]
    %vm263 = vcmp.gt.f32.partialorder %v262, 0.5
    %v264 = vxor.u32 %v256, 2147483648
    %v265 = vxor.u32 %v259, 2147483648
    %v266 = vmul.f32 %v264, 1.442695
    %v267 = vpow.pop %v266
    %v268 = vmul.f32 %v265, 1.442695
    %v269 = vpow.pop %v268
    %v270 = vadd.f32 %v267, 1.0
    %v271 = vadd.f32 %v269, 1.0
    %v272 = vrcp.pop %v270
    %v273 = vmul.f32 1.0, %v272
    %v274 = vrcp.pop %v271
    %v275 = vmul.f32 1.0, %v274
    %v276 = vsel %vm263, 1, 0
    %v277 = vlaneseq
    %v278 = vshrl.u32 %v277, 7
    %v279 = vsub.s32 0, %v278
    %v280 = vrot.slane %v276, %v279
    %vm281 = vcmp.eq.s32.totalorder %v280, 1
    %v282 = vsel %vm281, %v273, %v256
    %v283 = vsel %vm281, %v275, %v259
    %v284 = vld [vmem:[%s6] sm:$0x1]
    %v286 = vlaneseq
    %v287 = vshrl.u32 %v286, 7
    %v288 = vsub.s32 0, %v287
    %v289 = vrot.slane %v284, %v288
    %v291 = vmul.f32 %v282, %v289
    %v292 = vmul.f32 %v283, %v289
    %v293 = vld [vmem:[%s7] sm:$0x1]
    %v295 = vlaneseq
    %v296 = vshrl.u32 %v295, 7
    %v297 = vsub.s32 0, %v296
    %v298 = vrot.slane %v293, %v297
    %v300 = vadd.f32 %v291, %v298
    %v301 = vadd.f32 %v292, %v298
    %302 = vst [vmem:[#allocation8] sm:$0xff] %v300
    %303 = vst [vmem:[#allocation8 + $0x8] sm:$0xff] %v301
    // Predicated region
    $region46: #{tpu_custom_call.1} parent=1 // pred_check
      _
    $region47: #{tpu_custom_call.1} parent=1 // pred_check_branch
      %305 = sbr.rel (0) target = $region49
    $region48: #{tpu_custom_call.1} parent=1 // pred_region
      %s307 = ssub.s32 256, 256
      %308 = vsyncadd [#allocation4], %s307
      %s309 = sshll.u32 [#allocation8], 4
      %s310 = int_to_ptr.vmem [resolvable:$true] %s309
      %315 = dma.vmem_to_hbm [thread:$0]  %s310, 256, %s8, [#allocation4], 128, 128, 8
    $region49: #{tpu_custom_call.1} parent=1 // pred_fallthru
      _
    // Predicated region
    $region50: #{tpu_custom_call.1} parent=1 // pred_check
      _
    $region51: #{tpu_custom_call.1} parent=1 // pred_check_branch
      %317 = sbr.rel (0) target = $region53
    $region52: #{tpu_custom_call.1} parent=1 // pred_region
      %318 = dma.done [#allocation4], 256
    $region53: #{tpu_custom_call.1} parent=1 // pred_fallthru
      _
    %319 = vsyncpa [#allocation3], 1
    %320 = vsyncpa [#allocation6], 1
    %321 = vsyncpa [#allocation4], 1

</llo_original>
